<compile_context>
chip_gen: v6e
topology: v6e:2x2x1
jax: 0.10.0
libtpu: 0.0.40
codegen_flags: <defaults>
</compile_context>

<pallas_src>
import functools

import jax
import jax.numpy as jnp
from jax.experimental import pallas as pl
from jax.experimental.pallas import tpu as pltpu

LANE = 128


def _cdiv(a, b):
    return -(-a // b)


def _round_up(x, m):
    return _cdiv(x, m) * m


def _dice_sums_kernel(pred_ref, true_ref, inter_ref, psum_ref, tsum_ref,
                      acc_i, acc_p, acc_t, *, n_rows, cps, tk, n_classes):
    """Per-(batch, pixel-split) partial Dice sums.

    pred_ref : (1, C, TK, 128) probabilities in their native dtype.
    true_ref : (1, 1, TK, 128) int8 labels (-1 in padding; never reads OOB).
    outputs  : (1, 1, C, 1) f32 partial intersection / pred-sum / true-sum.
    scratch  : (C, 128) f32 lane-resident accumulators.
    """
    k = pl.program_id(2)

    @pl.when(k == 0)
    def _():
        acc_i[...] = jnp.zeros_like(acc_i)
        acc_p[...] = jnp.zeros_like(acc_p)
        acc_t[...] = jnp.zeros_like(acc_t)

    pred = pred_ref[0]                                   # (C, TK, 128) native
    labels = true_ref[0].astype(jnp.int32)               # (1, TK, 128)
    cls_ids = jax.lax.broadcasted_iota(jnp.int32, (n_classes, 1, LANE), 0)
    match = labels == cls_ids                            # (C, TK, 128) bool

    # Padded / garbage rows carry label -1 -> match is False there, so the
    # intersection and true-sum accumulators are exact with no extra masking.
    acc_i[...] += jnp.sum(jnp.where(match, pred, 0), axis=1, dtype=jnp.float32)
    acc_t[...] += jnp.sum(jnp.where(match, 1.0, 0.0), axis=1)

    # pred-sum needs an explicit row-validity mask only in the partial chunk.
    chunk = pl.program_id(1) * cps + k
    rows_left = n_rows - chunk * tk

    @pl.when(rows_left >= tk)
    def _():
        acc_p[...] += jnp.sum(pred, axis=1, dtype=jnp.float32)

    @pl.when(rows_left < tk)
    def _():
        row_id = jax.lax.broadcasted_iota(jnp.int32, (1, tk, LANE), 1)
        acc_p[...] += jnp.sum(jnp.where(row_id < rows_left, pred, 0),
                              axis=1, dtype=jnp.float32)

    @pl.when(k == cps - 1)
    def _():
        # Single cross-lane reduce + narrow (C, 1) store per (batch, split).
        inter_ref[0, 0] = jnp.sum(acc_i[...], axis=1, keepdims=True)
        psum_ref[0, 0] = jnp.sum(acc_p[...], axis=1, keepdims=True)
        tsum_ref[0, 0] = jnp.sum(acc_t[...], axis=1, keepdims=True)


@functools.partial(jax.jit, static_argnames=("classes", "one_hot", "ignore",
                                             "smooth", "max_rows"))
def custom_loss(y_pred, y_true, *, classes=2, one_hot=True, ignore=0,
                smooth=1e-5, max_rows=4096):
    assert one_hot, "only the one_hot=True path is implemented"
    # TODO(synk): one_hot=False branch (y_pred == i comparisons) not implemented.
    B, C, H, W = y_pred.shape
    assert C == classes
    assert classes <= 127, "int8 label path requires classes <= 127"
    HW = H * W

    n_rows = _cdiv(HW, LANE)
    hw128 = n_rows * LANE

    # Free reshape of NCHW; no copy of the prediction stream.
    pred3 = y_pred.reshape(B, C, HW)
    if hw128 != HW:
        # TODO(synk): sub-128 tail forces one pred copy; avoidable with a 3-D
        # (B, C, HW) block layout at the cost of sublane under-utilization.
        pred3 = jnp.pad(pred3, ((0, 0), (0, 0), (0, hw128 - HW)))
    pred4 = pred3.reshape(B, C, n_rows, LANE)

    # ---- C-/dtype-aware chunk sizing (rows of 128 pixels per grid step) ----
    item = jnp.dtype(y_pred.dtype).itemsize
    # double-buffered input blocks + ~5 f32 C-wide temps + i32 label temp.
    bytes_per_row = 2 * (C * LANE * item + LANE) + 5 * C * LANE * 4 + LANE * 4
    budget = 30 << 20
    rows_fit = max(32, min(max_rows, budget // bytes_per_row) // 32 * 32)

    if n_rows <= rows_fit:
        n_splits, cps, tk = 1, 1, n_rows
    else:
        n_splits = 2                     # pixel-axis megacore split (v7x)
        cps = _cdiv(_cdiv(n_rows, n_splits), rows_fit)
        tk = _round_up(_cdiv(n_rows, n_splits * cps), 32)
    n_slots = n_splits * cps             # total chunk slots in the grid
    last_pred_blk = _cdiv(n_rows, tk) - 1

    # Labels: int8 stream, padded with -1 to the grid extent (tiny copy).
    labels3 = y_true.reshape(B, 1, HW).astype(jnp.int8)
    lab_pad = n_slots * tk * LANE - HW
    if lab_pad:
        labels3 = jnp.pad(labels3, ((0, 0), (0, 0), (0, lab_pad)),
                          constant_values=-1)
    labels4 = labels3.reshape(B, 1, n_slots * tk, LANE)

    vmem_limit = int(min(48 << 20,
                         max(32 << 20, bytes_per_row * tk + (6 << 20))))

    out_shape = tuple(jax.ShapeDtypeStruct((B, n_splits, C, 1), jnp.float32)
                      for _ in range(3))
    out_spec = pl.BlockSpec((1, 1, C, 1), lambda b, s, k: (b, s, 0, 0))

    def pred_map(b, s, k):
        # Clamp so a (fully padded) trailing chunk slot never indexes past the
        # pred array; its contribution is masked to zero inside the kernel.
        return (b, 0, jnp.minimum(s * cps + k, last_pred_blk), 0)

    def lab_map(b, s, k):
        return (b, 0, s * cps + k, 0)

    kernel = functools.partial(_dice_sums_kernel, n_rows=n_rows, cps=cps,
                               tk=tk, n_classes=C)

    inter_b, psum_b, tsum_b = pl.pallas_call(
        kernel,
        out_shape=out_shape,
        grid_spec=pltpu.PrefetchScalarGridSpec(
            num_scalar_prefetch=0,
            grid=(B, n_splits, cps),
            in_specs=[
                pl.BlockSpec((1, C, tk, LANE), pred_map),
                pl.BlockSpec((1, 1, tk, LANE), lab_map),
            ],
            out_specs=[out_spec, out_spec, out_spec],
            scratch_shapes=[pltpu.VMEM((C, LANE), jnp.float32)] * 3,
        ),
        compiler_params=pltpu.CompilerParams(
            dimension_semantics=("parallel", "parallel", "arbitrary"),
            vmem_limit_bytes=vmem_limit),
    )(pred4, labels4)

    inter = jnp.sum(inter_b[..., 0], axis=(0, 1))     # (C,)
    psum = jnp.sum(psum_b[..., 0], axis=(0, 1))
    tsum = jnp.sum(tsum_b[..., 0], axis=(0, 1))
    dice_per_class = (2.0 * inter + smooth) / (psum + tsum + smooth)

    if ignore is not None:
        cls_mask = jnp.ones((C,), jnp.float32).at[ignore].set(0.0)
        denom = classes - 1
    else:
        cls_mask = jnp.ones((C,), jnp.float32)
        denom = classes

    dsc = jnp.sum(dice_per_class * cls_mask) / denom
    return jnp.reshape(1.0 - dsc, (1,))     # matches torch.tensor([.]) shape


def _reference_loss(y_pred, y_true, classes, ignore, smooth):
    """Pure-JAX re-implementation of CustomLoss.forward for verification."""
    dscs = 0.0
    for i in range(classes):
        if i == ignore:
            continue
        p = y_pred[:, i].reshape(-1).astype(jnp.float32)
        t = (y_true == i).reshape(-1).astype(jnp.float32)
        inter = jnp.sum(p * t)
        dscs = dscs + (2.0 * inter + smooth) / (jnp.sum(p) + jnp.sum(t) + smooth)
    dsc = dscs / (classes if ignore is None else classes - 1)
    return 1.0 - dsc


if __name__ == "__main__":
    key = jax.random.PRNGKey(0)
    k1, k2, k3, k4 = jax.random.split(key, 4)

    # Case 1: small input, single-chunk path (B=2, C=4, 16x16).
    B, C, H, W = 2, 4, 16, 16
    y_pred = jax.nn.softmax(jax.random.normal(k1, (B, C, H, W), jnp.float32),
                            axis=1)
    y_true = jax.random.randint(k2, (B, H, W), 0, C, dtype=jnp.int32)
    loss = jax.block_until_ready(
        custom_loss(y_pred, y_true, classes=C, one_hot=True, ignore=0,
                    smooth=1e-5))
    ref = _reference_loss(y_pred, y_true, C, 0, 1e-5)
    assert loss.shape == (1,)
    assert abs(float(loss[0]) - float(ref)) < 1e-4, (float(loss[0]), float(ref))

    # Case 2: forces the chunked + pixel-split + partial-tail-mask paths
    # (still small: 80x80, max_rows=32 -> 2 splits, masked last chunk).
    H2 = W2 = 80
    y_pred2 = jax.nn.softmax(jax.random.normal(k3, (B, C, H2, W2), jnp.float32),
                             axis=1)
    y_true2 = jax.random.randint(k4, (B, H2, W2), 0, C, dtype=jnp.int32)
    loss2 = jax.block_until_ready(
        custom_loss(y_pred2, y_true2, classes=C, one_hot=True, ignore=0,
                    smooth=1e-5, max_rows=32))
    ref2 = _reference_loss(y_pred2, y_true2, C, 0, 1e-5)
    assert abs(float(loss2[0]) - float(ref2)) < 1e-4, (float(loss2[0]),
                                                       float(ref2))

    print("KERNEL_OK")
</pallas_src>

<mosaic_0001>
module attributes {stable_mosaic.version = 11 : i64} {
  func.func @_dice_sums_kernel(%arg0: i32, %arg1: i32, %arg2: i32, %arg3: memref<1x4x2x128xf32, #tpu.memory_space<vmem>>, %arg4: memref<1x1x2x128xi8, #tpu.memory_space<vmem>>, %arg5: memref<1x1x4x1xf32, #tpu.memory_space<vmem>>, %arg6: memref<1x1x4x1xf32, #tpu.memory_space<vmem>>, %arg7: memref<1x1x4x1xf32, #tpu.memory_space<vmem>>, %arg8: memref<4x128xf32, #tpu.memory_space<vmem>>, %arg9: memref<4x128xf32, #tpu.memory_space<vmem>>, %arg10: memref<4x128xf32, #tpu.memory_space<vmem>>) attributes {dimension_semantics = [#tpu.dimension_semantics<parallel>, #tpu.dimension_semantics<parallel>, #tpu.dimension_semantics<arbitrary>], iteration_bounds = array<i64: 2, 1, 1>, scalar_prefetch = 0 : i64, scratch_operands = 3 : i64, tpu.core_type = #tpu.core_type<tc>, window_params = [{transform_indices = @transform_0, window_bounds = array<i64: 1, 4, 2, 128>}, {transform_indices = @transform_1, window_bounds = array<i64: 1, 1, 2, 128>}, {transform_indices = @transform_2, window_bounds = array<i64: 1, 1, 4, 1>}, {transform_indices = @transform_3, window_bounds = array<i64: 1, 1, 4, 1>}, {transform_indices = @transform_4, window_bounds = array<i64: 1, 1, 4, 1>}]} {
    %c0_i32 = arith.constant 0 : i32
    %0 = arith.cmpi eq, %arg2, %c0_i32 : i32
    %1 = arith.extui %0 : i1 to i32
    %c0_i32_0 = arith.constant 0 : i32
    %2 = arith.cmpi ne, %1, %c0_i32_0 : i32
    scf.if %2 {
      %cst_27 = arith.constant 0.000000e+00 : f32
      %39 = vector.broadcast %cst_27 : f32 to vector<4x128xf32>
      %c0_28 = arith.constant 0 : index
      %c0_29 = arith.constant 0 : index
      %40 = vector.load %arg8[%c0_28, %c0_29] : memref<4x128xf32, #tpu.memory_space<vmem>>, vector<4x128xf32>
      tpu.vector_store %arg8[%c0_28, %c0_29], %39 {strides = array<i32>} : memref<4x128xf32, #tpu.memory_space<vmem>>, vector<4x128xf32>,
      %cst_30 = arith.constant 0.000000e+00 : f32
      %41 = vector.broadcast %cst_30 : f32 to vector<4x128xf32>
      %c0_31 = arith.constant 0 : index
      %c0_32 = arith.constant 0 : index
      %42 = vector.load %arg9[%c0_31, %c0_32] : memref<4x128xf32, #tpu.memory_space<vmem>>, vector<4x128xf32>
      tpu.vector_store %arg9[%c0_31, %c0_32], %41 {strides = array<i32>} : memref<4x128xf32, #tpu.memory_space<vmem>>, vector<4x128xf32>,
      %cst_33 = arith.constant 0.000000e+00 : f32
      %43 = vector.broadcast %cst_33 : f32 to vector<4x128xf32>
      %c0_34 = arith.constant 0 : index
      %c0_35 = arith.constant 0 : index
      %44 = vector.load %arg10[%c0_34, %c0_35] : memref<4x128xf32, #tpu.memory_space<vmem>>, vector<4x128xf32>
      tpu.vector_store %arg10[%c0_34, %c0_35], %43 {strides = array<i32>} : memref<4x128xf32, #tpu.memory_space<vmem>>, vector<4x128xf32>,
    } else {
    }
    %c0 = arith.constant 0 : index
    %c0_1 = arith.constant 0 : index
    %c0_2 = arith.constant 0 : index
    %c0_3 = arith.constant 0 : index
    %3 = vector.load %arg3[%c0, %c0_1, %c0_2, %c0_3] : memref<1x4x2x128xf32, #tpu.memory_space<vmem>>, vector<1x4x2x128xf32>
    %4 = vector.shape_cast %3 : vector<1x4x2x128xf32> to vector<4x2x128xf32>
    %c0_4 = arith.constant 0 : index
    %c0_5 = arith.constant 0 : index
    %c0_6 = arith.constant 0 : index
    %c0_7 = arith.constant 0 : index
    %5 = vector.load %arg4[%c0_4, %c0_5, %c0_6, %c0_7] : memref<1x1x2x128xi8, #tpu.memory_space<vmem>>, vector<1x1x2x128xi8>
    %6 = vector.shape_cast %5 : vector<1x1x2x128xi8> to vector<1x2x128xi8>
    %7 = arith.extsi %6 : vector<1x2x128xi8> to vector<1x2x128xi32>
    %8 = tpu.iota {dimensions = array<i32: 0>} : vector<4x1x128xi32>
    %9 = vector.broadcast %7 : vector<1x2x128xi32> to vector<4x2x128xi32>
    %10 = vector.broadcast %8 : vector<4x1x128xi32> to vector<4x2x128xi32>
    %11 = arith.cmpi eq, %9, %10 : vector<4x2x128xi32>
    %c0_8 = arith.constant 0 : index
    %c0_9 = arith.constant 0 : index
    %12 = vector.load %arg8[%c0_8, %c0_9] : memref<4x128xf32, #tpu.memory_space<vmem>>, vector<4x128xf32>
    %c0_i32_10 = arith.constant 0 : i32
    %13 = arith.sitofp %c0_i32_10 : i32 to f32
    %14 = vector.broadcast %13 : f32 to vector<4x2x128xf32>
    %15 = arith.select %11, %4, %14 : vector<4x2x128xi1>, vector<4x2x128xf32>
    %cst = arith.constant dense<0.000000e+00> : vector<4x128xf32>
    %16 = vector.multi_reduction <add>, %15, %cst [1] : vector<4x2x128xf32> to vector<4x128xf32>
    %17 = arith.addf %12, %16 : vector<4x128xf32>
    %c0_11 = arith.constant 0 : index
    %c0_12 = arith.constant 0 : index
    %18 = vector.load %arg8[%c0_11, %c0_12] : memref<4x128xf32, #tpu.memory_space<vmem>>, vector<4x128xf32>
    tpu.vector_store %arg8[%c0_11, %c0_12], %17 {strides = array<i32>} : memref<4x128xf32, #tpu.memory_space<vmem>>, vector<4x128xf32>,
    %c0_13 = arith.constant 0 : index
    %c0_14 = arith.constant 0 : index
    %19 = vector.load %arg10[%c0_13, %c0_14] : memref<4x128xf32, #tpu.memory_space<vmem>>, vector<4x128xf32>
    %cst_15 = arith.constant 1.000000e+00 : f32
    %cst_16 = arith.constant 0.000000e+00 : f32
    %20 = vector.broadcast %cst_15 : f32 to vector<4x2x128xf32>
    %21 = vector.broadcast %cst_16 : f32 to vector<4x2x128xf32>
    %22 = arith.select %11, %20, %21 : vector<4x2x128xi1>, vector<4x2x128xf32>
    %cst_17 = arith.constant dense<0.000000e+00> : vector<4x128xf32>
    %23 = vector.multi_reduction <add>, %22, %cst_17 [1] : vector<4x2x128xf32> to vector<4x128xf32>
    %24 = arith.addf %19, %23 : vector<4x128xf32>
    %c0_18 = arith.constant 0 : index
    %c0_19 = arith.constant 0 : index
    %25 = vector.load %arg10[%c0_18, %c0_19] : memref<4x128xf32, #tpu.memory_space<vmem>>, vector<4x128xf32>
    tpu.vector_store %arg10[%c0_18, %c0_19], %24 {strides = array<i32>} : memref<4x128xf32, #tpu.memory_space<vmem>>, vector<4x128xf32>,
    %c1_i32 = arith.constant 1 : i32
    %26 = arith.muli %arg1, %c1_i32 : i32
    %27 = arith.addi %26, %arg2 : i32
    %c2_i32 = arith.constant 2 : i32
    %28 = arith.muli %27, %c2_i32 : i32
    %c2_i32_20 = arith.constant 2 : i32
    %29 = arith.subi %c2_i32_20, %28 : i32
    %c2_i32_21 = arith.constant 2 : i32
    %30 = arith.cmpi sge, %29, %c2_i32_21 : i32
    %31 = arith.extui %30 : i1 to i32
    %c0_i32_22 = arith.constant 0 : i32
    %32 = arith.cmpi ne, %31, %c0_i32_22 : i32
    scf.if %32 {
      %c0_27 = arith.constant 0 : index
      %c0_28 = arith.constant 0 : index
      %39 = vector.load %arg9[%c0_27, %c0_28] : memref<4x128xf32, #tpu.memory_space<vmem>>, vector<4x128xf32>
      %cst_29 = arith.constant dense<0.000000e+00> : vector<4x128xf32>
      %40 = vector.multi_reduction <add>, %4, %cst_29 [1] : vector<4x2x128xf32> to vector<4x128xf32>
      %41 = arith.addf %39, %40 : vector<4x128xf32>
      %c0_30 = arith.constant 0 : index
      %c0_31 = arith.constant 0 : index
      %42 = vector.load %arg9[%c0_30, %c0_31] : memref<4x128xf32, #tpu.memory_space<vmem>>, vector<4x128xf32>
      tpu.vector_store %arg9[%c0_30, %c0_31], %41 {strides = array<i32>} : memref<4x128xf32, #tpu.memory_space<vmem>>, vector<4x128xf32>,
    } else {
    }
    %c2_i32_23 = arith.constant 2 : i32
    %33 = arith.cmpi slt, %29, %c2_i32_23 : i32
    %34 = arith.extui %33 : i1 to i32
    %c0_i32_24 = arith.constant 0 : i32
    %35 = arith.cmpi ne, %34, %c0_i32_24 : i32
    scf.if %35 {
      %39 = tpu.iota {dimensions = array<i32: 1>} : vector<1x2x128xi32>
      %c0_27 = arith.constant 0 : index
      %c0_28 = arith.constant 0 : index
      %40 = vector.load %arg9[%c0_27, %c0_28] : memref<4x128xf32, #tpu.memory_space<vmem>>, vector<4x128xf32>
      %41 = vector.broadcast %29 : i32 to vector<1x2x128xi32>
      %42 = arith.cmpi slt, %39, %41 : vector<1x2x128xi32>
      %c0_i32_29 = arith.constant 0 : i32
      %43 = arith.sitofp %c0_i32_29 : i32 to f32
      %44 = vector.shape_cast %42 : vector<1x2x128xi1> to vector<1x2x128xi1>
      %45 = vector.broadcast %44 : vector<1x2x128xi1> to vector<4x2x128xi1>
      %46 = vector.broadcast %43 : f32 to vector<4x2x128xf32>
      %47 = arith.select %45, %4, %46 : vector<4x2x128xi1>, vector<4x2x128xf32>
      %cst_30 = arith.constant dense<0.000000e+00> : vector<4x128xf32>
      %48 = vector.multi_reduction <add>, %47, %cst_30 [1] : vector<4x2x128xf32> to vector<4x128xf32>
      %49 = arith.addf %40, %48 : vector<4x128xf32>
      %c0_31 = arith.constant 0 : index
      %c0_32 = arith.constant 0 : index
      %50 = vector.load %arg9[%c0_31, %c0_32] : memref<4x128xf32, #tpu.memory_space<vmem>>, vector<4x128xf32>
      tpu.vector_store %arg9[%c0_31, %c0_32], %49 {strides = array<i32>} : memref<4x128xf32, #tpu.memory_space<vmem>>, vector<4x128xf32>,
    } else {
    }
    %c0_i32_25 = arith.constant 0 : i32
    %36 = arith.cmpi eq, %arg2, %c0_i32_25 : i32
    %37 = arith.extui %36 : i1 to i32
    %c0_i32_26 = arith.constant 0 : i32
    %38 = arith.cmpi ne, %37, %c0_i32_26 : i32
    scf.if %38 {
      %c0_27 = arith.constant 0 : index
      %c0_28 = arith.constant 0 : index
      %39 = vector.load %arg8[%c0_27, %c0_28] : memref<4x128xf32, #tpu.memory_space<vmem>>, vector<4x128xf32>
      %cst_29 = arith.constant dense<0.000000e+00> : vector<4xf32>
      %40 = vector.multi_reduction <add>, %39, %cst_29 [1] : vector<4x128xf32> to vector<4xf32>
      %41 = vector.shape_cast %40 : vector<4xf32> to vector<4x1xf32>
      %c0_30 = arith.constant 0 : index
      %c0_31 = arith.constant 0 : index
      %c0_32 = arith.constant 0 : index
      %c0_33 = arith.constant 0 : index
      %42 = vector.load %arg5[%c0_30, %c0_31, %c0_32, %c0_33] : memref<1x1x4x1xf32, #tpu.memory_space<vmem>>, vector<1x1x4x1xf32>
      %43 = vector.shape_cast %42 : vector<1x1x4x1xf32> to vector<4x1xf32>
      %44 = vector.shape_cast %41 : vector<4x1xf32> to vector<1x1x4x1xf32>
      tpu.vector_store %arg5[%c0_30, %c0_31, %c0_32, %c0_33], %44 {strides = array<i32>} : memref<1x1x4x1xf32, #tpu.memory_space<vmem>>, vector<1x1x4x1xf32>,
      %c0_34 = arith.constant 0 : index
      %c0_35 = arith.constant 0 : index
      %45 = vector.load %arg9[%c0_34, %c0_35] : memref<4x128xf32, #tpu.memory_space<vmem>>, vector<4x128xf32>
      %cst_36 = arith.constant dense<0.000000e+00> : vector<4xf32>
      %46 = vector.multi_reduction <add>, %45, %cst_36 [1] : vector<4x128xf32> to vector<4xf32>
      %47 = vector.shape_cast %46 : vector<4xf32> to vector<4x1xf32>
      %c0_37 = arith.constant 0 : index
      %c0_38 = arith.constant 0 : index
      %c0_39 = arith.constant 0 : index
      %c0_40 = arith.constant 0 : index
      %48 = vector.load %arg6[%c0_37, %c0_38, %c0_39, %c0_40] : memref<1x1x4x1xf32, #tpu.memory_space<vmem>>, vector<1x1x4x1xf32>
      %49 = vector.shape_cast %48 : vector<1x1x4x1xf32> to vector<4x1xf32>
      %50 = vector.shape_cast %47 : vector<4x1xf32> to vector<1x1x4x1xf32>
      tpu.vector_store %arg6[%c0_37, %c0_38, %c0_39, %c0_40], %50 {strides = array<i32>} : memref<1x1x4x1xf32, #tpu.memory_space<vmem>>, vector<1x1x4x1xf32>,
      %c0_41 = arith.constant 0 : index
      %c0_42 = arith.constant 0 : index
      %51 = vector.load %arg10[%c0_41, %c0_42] : memref<4x128xf32, #tpu.memory_space<vmem>>, vector<4x128xf32>
      %cst_43 = arith.constant dense<0.000000e+00> : vector<4xf32>
      %52 = vector.multi_reduction <add>, %51, %cst_43 [1] : vector<4x128xf32> to vector<4xf32>
      %53 = vector.shape_cast %52 : vector<4xf32> to vector<4x1xf32>
      %c0_44 = arith.constant 0 : index
      %c0_45 = arith.constant 0 : index
      %c0_46 = arith.constant 0 : index
      %c0_47 = arith.constant 0 : index
      %54 = vector.load %arg7[%c0_44, %c0_45, %c0_46, %c0_47] : memref<1x1x4x1xf32, #tpu.memory_space<vmem>>, vector<1x1x4x1xf32>
      %55 = vector.shape_cast %54 : vector<1x1x4x1xf32> to vector<4x1xf32>
      %56 = vector.shape_cast %53 : vector<4x1xf32> to vector<1x1x4x1xf32>
      tpu.vector_store %arg7[%c0_44, %c0_45, %c0_46, %c0_47], %56 {strides = array<i32>} : memref<1x1x4x1xf32, #tpu.memory_space<vmem>>, vector<1x1x4x1xf32>,
    } else {
    }
    return
  }
  func.func @transform_0(%arg0: i32, %arg1: i32, %arg2: i32) -> (i32, i32, i32, i32) {
    %c1_i32 = arith.constant 1 : i32
    %0 = arith.muli %arg1, %c1_i32 : i32
    %1 = arith.addi %0, %arg2 : i32
    %c0_i32 = arith.constant 0 : i32
    %2 = arith.minsi %1, %c0_i32 : i32
    %c0_i32_0 = arith.constant 0 : i32
    %c0_i32_1 = arith.constant 0 : i32
    %c0_i32_2 = arith.constant 0 : i32
    return %arg0, %c0_i32_0, %2, %c0_i32_1 : i32, i32, i32, i32
  }
  func.func @transform_1(%arg0: i32, %arg1: i32, %arg2: i32) -> (i32, i32, i32, i32) {
    %c1_i32 = arith.constant 1 : i32
    %0 = arith.muli %arg1, %c1_i32 : i32
    %1 = arith.addi %0, %arg2 : i32
    %c0_i32 = arith.constant 0 : i32
    %c0_i32_0 = arith.constant 0 : i32
    %c0_i32_1 = arith.constant 0 : i32
    return %arg0, %c0_i32, %1, %c0_i32_0 : i32, i32, i32, i32
  }
  func.func @transform_2(%arg0: i32, %arg1: i32, %arg2: i32) -> (i32, i32, i32, i32) {
    %c0_i32 = arith.constant 0 : i32
    %c0_i32_0 = arith.constant 0 : i32
    %c0_i32_1 = arith.constant 0 : i32
    return %arg0, %arg1, %c0_i32, %c0_i32_0 : i32, i32, i32, i32
  }
  func.func @transform_3(%arg0: i32, %arg1: i32, %arg2: i32) -> (i32, i32, i32, i32) {
    %c0_i32 = arith.constant 0 : i32
    %c0_i32_0 = arith.constant 0 : i32
    %c0_i32_1 = arith.constant 0 : i32
    return %arg0, %arg1, %c0_i32, %c0_i32_0 : i32, i32, i32, i32
  }
  func.func @transform_4(%arg0: i32, %arg1: i32, %arg2: i32) -> (i32, i32, i32, i32) {
    %c0_i32 = arith.constant 0 : i32
    %c0_i32_0 = arith.constant 0 : i32
    %c0_i32_1 = arith.constant 0 : i32
    return %arg0, %arg1, %c0_i32, %c0_i32_0 : i32, i32, i32, i32
  }
}

</mosaic_0001>

<llo_original>
// kernel: custom_loss.1
$region0: #{custom_loss.1}
  #allocation0 [shape = 'u32[]', space=smem, size = 0x4, offset = 0x4, fixed_abs, tag = 'smem constant byte address 0x4 - core index']
  #allocation1 [shape = 'u32[144,128]{1,0:T(1,128)}', space=vmem, size = 0x12000, scoped, tag = 'internal scratch']
  #allocation2 [shape = 'f32[4,128]{1,0:T(4,128)}', space=vmem, size = 0x800, scoped, tag = 'scratch operand']
  #allocation3 [shape = 'f32[4,128]{1,0:T(4,128)}', space=vmem, size = 0x800, scoped, tag = 'scratch operand']
  #allocation4 [shape = 'f32[4,128]{1,0:T(4,128)}', space=vmem, size = 0x800, scoped, tag = 'scratch operand']
  %s0 = inlined_call_operand.vmem [shape: f32[2,4,2,128], index: 0, kind: input, shape index: {}]
  %s1 = inlined_call_operand.vmem [shape: s8[2,1,2,128], index: 1, kind: input, shape index: {}]
  %s2 = inlined_call_operand.vmem [shape: f32[2,1,4,1], index: 2, kind: output, shape index: {0}]
  %s3 = inlined_call_operand.vmem [shape: f32[2,1,4,1], index: 3, kind: output, shape index: {1}]
  %s4 = inlined_call_operand.vmem [shape: f32[2,1,4,1], index: 4, kind: output, shape index: {2}]
  %5 = xla_tuple %s2, %s3, %s4
  %s6 = sld [smem:[#allocation0]]
  $region73: #{custom_loss.1} parent=0
    _
  %s8 = ssub.s32 1, %s6
  %s9 = scalar_select 0, %s8, %s6
  loop: start=0, step=1, limit=4
  $region2: #{custom_loss.1} parent=0 // loop_pre_header
    _
  $region3: #{custom_loss.1} parent=0 // loop_header
    %s11 = sphi 0, %s15
    %p12 = scmp.ge.s32.totalorder %s11, 4
    %s18 = sphi 0, %s37
    %s19 = sphi 0, %s33
    %s20 = sphi 0, %s29
    %s21 = sphi 0, %s18
    %s22 = sphi 0, %s19
    %s23 = sphi 0, %s20
    %s24 = sphi 0, %s21
    %s25 = sphi 0, %s22
    %s26 = sphi 0, %s23
    %s48 = sphi 0, %s50
    %s51 = sphi 0, %s48
    %s52 = sphi 0, %s51
    %s68 = sphi 0, %s52
    %s78 = sphi 0, %s80
    %s81 = sphi 0, %s78
    %s82 = sphi 0, %s81
    %s98 = sphi 0, %s82
    %s106 = sphi 0, %s108
    %s109 = sphi 0, %s106
    %s110 = sphi 0, %s109
    %s126 = sphi 0, %s110
    %s134 = sphi 0, %s136
    %s137 = sphi 0, %s134
    %s138 = sphi 0, %s137
    %s154 = sphi 0, %s138
    %s162 = sphi 0, %s164
    %s165 = sphi 0, %s162
    %s166 = sphi 0, %s165
    %s182 = sphi 0, %s166
  $region4: #{custom_loss.1} parent=0 // loop_header_branch
    %14 = sbr.rel (%p12) target = $region8
  $region5: #{custom_loss.1} parent=0 // loop_body
    %s16 = ssub.s32 %s11, 1
    %s17 = ssub.s32 %s11, 2
    %s27 = sadd.s32 1, %s20
    %p28 = scmp.ge.s32.totalorder %s27, 1
    %s29 = scalar_select %p28, 0, %s27
    %s30 = sadd.s32 1, %s19
    %s31 = scalar_select %p28, %s30, %s19
    %p32 = scmp.ge.s32.totalorder %s31, 1
    %s33 = scalar_select %p32, 0, %s31
    %s34 = sadd.s32 1, %s18
    %s35 = scalar_select %p32, %s34, %s18
    %p36 = scmp.ge.s32.totalorder %s35, 2
    %s37 = scalar_select %p36, 0, %s35
    %s38 = sadd.s32 %s19, %s20
    %p39 = scmp.lt.s32.totalorder %s38, 0
    %s40 = scalar_select %p39, %s38, 0
    %s41 = sadd.s32 %s33, %s29
    %p42 = scmp.lt.s32.totalorder %s41, 0
    %s43 = scalar_select %p42, %s41, 0
    %s44 = ssub.s32 %s18, %s37
    %s45 = ssub.s32 %s40, %s43
    %s46 = sor.u32 %s44, %s45
    %p47 = scmp.eq.s32.totalorder %s46, 0
    %s49 = sadd.s32 %s48, 1
    %s50 = scalar_select %p47, %s48, %s49
    %p53 = pneg %p47
    %p54 = scmp.eq.s32.totalorder %s11, 1
    %p55 = por %p53, %p54
    %p56 = scmp.ne.s32.totalorder %s48, %s51
    %p57 = scmp.eq.s32.totalorder %s11, 0
    %p58 = por %p56, %p57
    %p59 = scmp.ne.s32.totalorder %s48, %s51
    %p60 = scmp.eq.s32.totalorder %s16, 1
    %p61 = por %p59, %p60
    %p62 = scmp.ne.s32.totalorder %s51, %s52
    %p63 = scmp.eq.s32.totalorder %s16, 0
    %p64 = por %p62, %p63
    %p65 = scmp.ne.s32.totalorder %s51, %s52
    %p66 = scmp.eq.s32.totalorder %s17, 1
    %p67 = por %p65, %p66
    %p69 = scmp.ne.s32.totalorder %s52, %s68
    %p70 = scmp.eq.s32.totalorder %s17, 0
    %p71 = por %p69, %p70
    %s72 = sadd.s32 %s19, %s20
    %s73 = sadd.s32 %s33, %s29
    %s74 = ssub.s32 %s18, %s37
    %s75 = ssub.s32 %s72, %s73
    %s76 = sor.u32 %s74, %s75
    %p77 = scmp.eq.s32.totalorder %s76, 0
    %s79 = sadd.s32 %s78, 1
    %s80 = scalar_select %p77, %s78, %s79
    %p83 = pneg %p77
    %p84 = scmp.eq.s32.totalorder %s11, 1
    %p85 = por %p83, %p84
    %p86 = scmp.ne.s32.totalorder %s78, %s81
    %p87 = scmp.eq.s32.totalorder %s11, 0
    %p88 = por %p86, %p87
    %p89 = scmp.ne.s32.totalorder %s78, %s81
    %p90 = scmp.eq.s32.totalorder %s16, 1
    %p91 = por %p89, %p90
    %p92 = scmp.ne.s32.totalorder %s81, %s82
    %p93 = scmp.eq.s32.totalorder %s16, 0
    %p94 = por %p92, %p93
    %p95 = scmp.ne.s32.totalorder %s81, %s82
    %p96 = scmp.eq.s32.totalorder %s17, 1
    %p97 = por %p95, %p96
    %p99 = scmp.ne.s32.totalorder %s82, %s98
    %p100 = scmp.eq.s32.totalorder %s17, 0
    %p101 = por %p99, %p100
    %s102 = ssub.s32 %s18, %s37
    %s103 = ssub.s32 %s19, %s33
    %s104 = sor.u32 %s102, %s103
    %p105 = scmp.eq.s32.totalorder %s104, 0
    %s107 = sadd.s32 %s106, 1
    %s108 = scalar_select %p105, %s106, %s107
    %p111 = pneg %p105
    %p112 = scmp.eq.s32.totalorder %s11, 1
    %p113 = por %p111, %p112
    %p114 = scmp.ne.s32.totalorder %s106, %s109
    %p115 = scmp.eq.s32.totalorder %s11, 0
    %p116 = por %p114, %p115
    %p117 = scmp.ne.s32.totalorder %s106, %s109
    %p118 = scmp.eq.s32.totalorder %s16, 1
    %p119 = por %p117, %p118
    %p120 = scmp.ne.s32.totalorder %s109, %s110
    %p121 = scmp.eq.s32.totalorder %s16, 0
    %p122 = por %p120, %p121
    %p123 = scmp.ne.s32.totalorder %s109, %s110
    %p124 = scmp.eq.s32.totalorder %s17, 1
    %p125 = por %p123, %p124
    %p127 = scmp.ne.s32.totalorder %s110, %s126
    %p128 = scmp.eq.s32.totalorder %s17, 0
    %p129 = por %p127, %p128
    %s130 = ssub.s32 %s18, %s37
    %s131 = ssub.s32 %s19, %s33
    %s132 = sor.u32 %s130, %s131
    %p133 = scmp.eq.s32.totalorder %s132, 0
    %s135 = sadd.s32 %s134, 1
    %s136 = scalar_select %p133, %s134, %s135
    %p139 = pneg %p133
    %p140 = scmp.eq.s32.totalorder %s11, 1
    %p141 = por %p139, %p140
    %p142 = scmp.ne.s32.totalorder %s134, %s137
    %p143 = scmp.eq.s32.totalorder %s11, 0
    %p144 = por %p142, %p143
    %p145 = scmp.ne.s32.totalorder %s134, %s137
    %p146 = scmp.eq.s32.totalorder %s16, 1
    %p147 = por %p145, %p146
    %p148 = scmp.ne.s32.totalorder %s137, %s138
    %p149 = scmp.eq.s32.totalorder %s16, 0
    %p150 = por %p148, %p149
    %p151 = scmp.ne.s32.totalorder %s137, %s138
    %p152 = scmp.eq.s32.totalorder %s17, 1
    %p153 = por %p151, %p152
    %p155 = scmp.ne.s32.totalorder %s138, %s154
    %p156 = scmp.eq.s32.totalorder %s17, 0
    %p157 = por %p155, %p156
    %s158 = ssub.s32 %s18, %s37
    %s159 = ssub.s32 %s19, %s33
    %s160 = sor.u32 %s158, %s159
    %p161 = scmp.eq.s32.totalorder %s160, 0
    %s163 = sadd.s32 %s162, 1
    %s164 = scalar_select %p161, %s162, %s163
    %p167 = pneg %p161
    %p168 = scmp.eq.s32.totalorder %s11, 1
    %p169 = por %p167, %p168
    %p170 = scmp.ne.s32.totalorder %s162, %s165
    %p171 = scmp.eq.s32.totalorder %s11, 0
    %p172 = por %p170, %p171
    %p173 = scmp.ne.s32.totalorder %s162, %s165
    %p174 = scmp.eq.s32.totalorder %s16, 1
    %p175 = por %p173, %p174
    %p176 = scmp.ne.s32.totalorder %s165, %s166
    %p177 = scmp.eq.s32.totalorder %s16, 0
    %p178 = por %p176, %p177
    %p179 = scmp.ne.s32.totalorder %s165, %s166
    %p180 = scmp.eq.s32.totalorder %s17, 1
    %p181 = por %p179, %p180
    %p183 = scmp.ne.s32.totalorder %s166, %s182
    %p184 = scmp.eq.s32.totalorder %s17, 0
    %p185 = por %p183, %p184
    %p186 = scmp.le.s32.totalorder 1, %s11
    %p187 = scmp.lt.s32.totalorder %s11, 3
    %p188 = pnand %p186, %p187
    %p189 = pneg %p188
    // Predicated region
    $region9: #{custom_loss.1} parent=5 // pred_check
      _
    $region10: #{custom_loss.1} parent=5 // pred_check_branch
      %191 = sbr.rel (%p188) target = $region12
    $region11: #{custom_loss.1} parent=5 // pred_region
      %s192 = ssub.s32 %s11, 1
    $region12: #{custom_loss.1} parent=5 // pred_fallthru
      _
    %p193 = scmp.lt.s32.totalorder %s11, 2
    // Predicated region
    $region13: #{custom_loss.1} parent=5 // pred_check
      %p194 = pneg %p193
    $region14: #{custom_loss.1} parent=5 // pred_check_branch
      %196 = sbr.rel (%p194) target = $region16
    $region15: #{custom_loss.1} parent=5 // pred_region
      // Predicated region
      $region17: #{custom_loss.1} parent=15 // pred_check
        %p197 = pneg %p58
      $region18: #{custom_loss.1} parent=15 // pred_check_branch
        %199 = sbr.rel (%p197) target = $region20
      $region19: #{custom_loss.1} parent=15 // pred_region
        %s200 = sadd.s32 %s19, %s20
        %p201 = scmp.lt.s32.totalorder %s200, 0
        %s202 = scalar_select %p201, %s200, 0
        %p203 = scmp.lt.s32.totalorder %s18, 1
        %s204 = scalar_select %p203, %s18, 1
        %p205 = scmp.lt.s32.totalorder %s202, 0
        %s206 = scalar_select %p205, %s202, 0
        %s207 = smul.addr %s204, 4
        %s208 = sadd.s32 %s206, %s207
        %s209 = smul.addr %s208, 2
        %s210 = scalar_lea.vmem %s0, %s209
        %s211 = sadd.s32 %s19, %s20
        %p212 = scmp.lt.s32.totalorder %s211, 0
        %s213 = scalar_select %p212, %s211, 0
      $region20: #{custom_loss.1} parent=15 // pred_fallthru
        _
      // Predicated region
      $region21: #{custom_loss.1} parent=15 // pred_check
        %p214 = pneg %p88
      $region22: #{custom_loss.1} parent=15 // pred_check_branch
        %216 = sbr.rel (%p214) target = $region24
      $region23: #{custom_loss.1} parent=15 // pred_region
        %s217 = sadd.s32 %s19, %s20
        %p218 = scmp.lt.s32.totalorder %s18, 1
        %s219 = scalar_select %p218, %s18, 1
        %p220 = scmp.lt.s32.totalorder %s217, 0
        %s221 = scalar_select %p220, %s217, 0
        %s222 = sadd.s32 %s221, %s219
        %s223 = scalar_lea.vmem %s1, %s222
        %s224 = sadd.s32 %s19, %s20
      $region24: #{custom_loss.1} parent=15 // pred_fallthru
        _
    $region16: #{custom_loss.1} parent=5 // pred_fallthru
      _
    %p225 = scmp.le.s32.totalorder 1, %s11
    %p226 = scmp.lt.s32.totalorder %s11, 3
    %p227 = pnand %p225, %p226
    %p228 = pneg %p227
    // Predicated region
    $region25: #{custom_loss.1} parent=5 // pred_check
      _
    $region26: #{custom_loss.1} parent=5 // pred_check_branch
      %230 = sbr.rel (%p227) target = $region28
    $region27: #{custom_loss.1} parent=5 // pred_region
      %s231 = ssub.s32 %s11, 1
      %s232 = sadd.s32 %s22, %s23
      %p233 = scmp.lt.s32.totalorder %s232, 0
      %s234 = scalar_select %p233, %s232, 0
      %p235 = scmp.lt.s32.totalorder %s21, 1
      %s236 = scalar_select %p235, %s21, 1
      %p237 = scmp.lt.s32.totalorder %s234, 0
      %s238 = scalar_select %p237, %s234, 0
      %s239 = smul.addr %s236, 4
      %s240 = sadd.s32 %s238, %s239
      %s241 = smul.addr %s240, 2
      %s242 = scalar_lea.vmem %s0, %s241
      %p243 = pneg %p64
      %p244 = pneg %p61
      %s245 = sadd.s32 %s22, %s23
      %p246 = scmp.lt.s32.totalorder %s21, 1
      %s247 = scalar_select %p246, %s21, 1
      %p248 = scmp.lt.s32.totalorder %s245, 0
      %s249 = scalar_select %p248, %s245, 0
      %s250 = sadd.s32 %s249, %s247
      %s251 = scalar_lea.vmem %s1, %s250
      %p252 = pneg %p94
      %p253 = pneg %p91
      %p254 = pneg %p122
      %p255 = pneg %p119
      %p256 = scmp.lt.s32.totalorder %s21, 1
      %s257 = scalar_select %p256, %s21, 1
      %p258 = scmp.lt.s32.totalorder %s22, 0
      %s259 = scalar_select %p258, %s22, 0
      %s260 = sadd.s32 %s259, %s257
      %s261 = smul.addr %s260, 4
      %s262 = scalar_lea.vmem %s2, %s261
      %p263 = pneg %p150
      %p264 = pneg %p147
      %p265 = scmp.lt.s32.totalorder %s21, 1
      %s266 = scalar_select %p265, %s21, 1
      %p267 = scmp.lt.s32.totalorder %s22, 0
      %s268 = scalar_select %p267, %s22, 0
      %s269 = sadd.s32 %s268, %s266
      %s270 = smul.addr %s269, 4
      %s271 = scalar_lea.vmem %s3, %s270
      %p272 = pneg %p178
      %p273 = pneg %p175
      %p274 = scmp.lt.s32.totalorder %s21, 1
      %s275 = scalar_select %p274, %s21, 1
      %p276 = scmp.lt.s32.totalorder %s22, 0
      %s277 = scalar_select %p276, %s22, 0
      %s278 = sadd.s32 %s277, %s275
      %s279 = smul.addr %s278, 4
      %s280 = scalar_lea.vmem %s4, %s279
      %s281 = sadd.s32 %s22, %s23
      %p282 = scmp.lt.s32.totalorder %s281, 0
      %s283 = scalar_select %p282, %s281, 0
      %p284 = scmp.lt.s32.totalorder %s21, 1
      %s285 = scalar_select %p284, %s21, 1
      %p286 = scmp.lt.s32.totalorder %s283, 0
      %s287 = scalar_select %p286, %s283, 0
      %s288 = smul.addr %s285, 4
      %s289 = sadd.s32 %s287, %s288
      %s290 = smul.addr %s289, 2
      %s291 = scalar_lea.vmem %s0, %s290
      %s292 = sadd.s32 %s22, %s23
      %p293 = scmp.lt.s32.totalorder %s292, 0
      %s294 = scalar_select %p293, %s292, 0
      %s295 = sadd.s32 %s22, %s23
      %p296 = scmp.lt.s32.totalorder %s21, 1
      %s297 = scalar_select %p296, %s21, 1
      %p298 = scmp.lt.s32.totalorder %s295, 0
      %s299 = scalar_select %p298, %s295, 0
      %s300 = sadd.s32 %s299, %s297
      %s301 = scalar_lea.vmem %s1, %s300
      %s302 = sadd.s32 %s22, %s23
      %p303 = scmp.lt.s32.totalorder %s21, 1
      %s304 = scalar_select %p303, %s21, 1
      %p305 = scmp.lt.s32.totalorder %s22, 0
      %s306 = scalar_select %p305, %s22, 0
      %s307 = sadd.s32 %s306, %s304
      %s308 = smul.addr %s307, 4
      %s309 = scalar_lea.vmem %s2, %s308
      %p310 = scmp.lt.s32.totalorder %s21, 1
      %s311 = scalar_select %p310, %s21, 1
      %p312 = scmp.lt.s32.totalorder %s22, 0
      %s313 = scalar_select %p312, %s22, 0
      %s314 = sadd.s32 %s313, %s311
      %s315 = smul.addr %s314, 4
      %s316 = scalar_lea.vmem %s3, %s315
      %p317 = scmp.lt.s32.totalorder %s21, 1
      %s318 = scalar_select %p317, %s21, 1
      %p319 = scmp.lt.s32.totalorder %s22, 0
      %s320 = scalar_select %p319, %s22, 0
      %s321 = sadd.s32 %s320, %s318
      %s322 = smul.addr %s321, 4
      %s323 = scalar_lea.vmem %s4, %s322
      %p324 = scmp.eq.s32.totalorder %s23, 0
      // Predicated region
      $region29: #{custom_loss.1} parent=27 // pred_check
        %p325 = pneg %p324
      $region30: #{custom_loss.1} parent=27 // pred_check_branch
        %327 = sbr.rel (%p325) target = $region32
      $region31: #{custom_loss.1} parent=27 // pred_region
        %328 = vst [vmem:[#allocation2] sm:$0xf] 0.0
        %329 = vst [vmem:[#allocation3] sm:$0xf] 0.0
        %330 = vst [vmem:[#allocation4] sm:$0xf] 0.0
      $region32: #{custom_loss.1} parent=27 // pred_fallthru
        _
      %v331 = vld [vmem:[%s291] sm:$0x3]
      %v332 = vld [vmem:[%s291 + $0x2] sm:$0x3]
      %v333 = vld [vmem:[%s291 + $0x4] sm:$0x3]
      %v334 = vld [vmem:[%s291 + $0x6] sm:$0x3]
      %v335 = vld [vmem:[%s301] sm:$0x1]
      %v336 = vunpack.c.0.s8 %v335
      %vm337 = vcmp.eq.s32.totalorder %v336, 0
      %vm338 = vcmp.eq.s32.totalorder %v336, 1
      %vm339 = vcmp.eq.s32.totalorder %v336, 2
      %vm340 = vcmp.eq.s32.totalorder %v336, 3
      %v341 = vld [vmem:[#allocation2] sm:$0xf]
      %v342 = vsel %vm337, %v331, 0.0
      %v343 = vsel %vm338, %v332, 0.0
      %v344 = vsel %vm339, %v333, 0.0
      %v345 = vsel %vm340, %v334, 0.0
      %vm346 = vcmask 1041408
      %v347 = vsel %vm346, %v342, 0.0
      %v348 = vrot.slane %v347, 4
      %v349 = vadd.f32 %v347, %v348
      %v350 = vrot.slane %v349, 2
      %v351 = vadd.f32 %v349, %v350
      %v352 = vrot.slane %v351, 1
      %v353 = vadd.f32 %v351, %v352
      %v354 = vsel %vm346, %v343, 0.0
      %v355 = vrot.slane %v354, 4
      %v356 = vadd.f32 %v354, %v355
      %v357 = vrot.slane %v356, 2
      %v358 = vadd.f32 %v356, %v357
      %v359 = vrot.slane %v358, 1
      %v360 = vadd.f32 %v358, %v359
      %v361 = vsel %vm346, %v344, 0.0
      %v362 = vrot.slane %v361, 4
      %v363 = vadd.f32 %v361, %v362
      %v364 = vrot.slane %v363, 2
      %v365 = vadd.f32 %v363, %v364
      %v366 = vrot.slane %v365, 1
      %v367 = vadd.f32 %v365, %v366
      %v368 = vsel %vm346, %v345, 0.0
      %v369 = vrot.slane %v368, 4
      %v370 = vadd.f32 %v368, %v369
      %v371 = vrot.slane %v370, 2
      %v372 = vadd.f32 %v370, %v371
      %v373 = vrot.slane %v372, 1
      %v374 = vadd.f32 %v372, %v373
      %vm379 = vcmask 1041409
      %v380 = vsel %vm379, %v360, %v353
      %vm381 = vcmask 1042434
      %v382 = vsel %vm381, %v367, %v380
      %vm383 = vcmask 1043459
      %v384 = vsel %vm383, %v374, %v382
      %v386 = vadd.f32 %v341, %v384
      %387 = vst [vmem:[#allocation2] sm:$0xf] %v386
      %v388 = vld [vmem:[#allocation4] sm:$0xf]
      %v389 = vsel %vm337, 1.0, 0.0
      %v390 = vsel %vm338, 1.0, 0.0
      %v391 = vsel %vm339, 1.0, 0.0
      %v392 = vsel %vm340, 1.0, 0.0
      %v393 = vsel %vm346, %v389, 0.0
      %v394 = vrot.slane %v393, 4
      %v395 = vadd.f32 %v393, %v394
      %v396 = vrot.slane %v395, 2
      %v397 = vadd.f32 %v395, %v396
      %v398 = vrot.slane %v397, 1
      %v399 = vadd.f32 %v397, %v398
      %v400 = vsel %vm346, %v390, 0.0
      %v401 = vrot.slane %v400, 4
      %v402 = vadd.f32 %v400, %v401
      %v403 = vrot.slane %v402, 2
      %v404 = vadd.f32 %v402, %v403
      %v405 = vrot.slane %v404, 1
      %v406 = vadd.f32 %v404, %v405
      %v407 = vsel %vm346, %v391, 0.0
      %v408 = vrot.slane %v407, 4
      %v409 = vadd.f32 %v407, %v408
      %v410 = vrot.slane %v409, 2
      %v411 = vadd.f32 %v409, %v410
      %v412 = vrot.slane %v411, 1
      %v413 = vadd.f32 %v411, %v412
      %v414 = vsel %vm346, %v392, 0.0
      %v415 = vrot.slane %v414, 4
      %v416 = vadd.f32 %v414, %v415
      %v417 = vrot.slane %v416, 2
      %v418 = vadd.f32 %v416, %v417
      %v419 = vrot.slane %v418, 1
      %v420 = vadd.f32 %v418, %v419
      %v425 = vsel %vm379, %v406, %v399
      %v426 = vsel %vm381, %v413, %v425
      %v427 = vsel %vm383, %v420, %v426
      %v429 = vadd.f32 %v388, %v427
      %430 = vst [vmem:[#allocation4] sm:$0xf] %v429
      %s431 = sadd.s32 %s22, %s23
      %s432 = smul.u32 %s431, 2
      %s433 = ssub.s32 2, %s432
      %p434 = scmp.ge.s32.totalorder %s433, 2
      // Predicated region
      $region33: #{custom_loss.1} parent=27 // pred_check
        %p435 = pneg %p434
      $region34: #{custom_loss.1} parent=27 // pred_check_branch
        %437 = sbr.rel (%p435) target = $region36
      $region35: #{custom_loss.1} parent=27 // pred_region
        %v438 = vld [vmem:[#allocation3] sm:$0xf]
        %v439 = vsel %vm346, %v331, 0.0
        %v440 = vrot.slane %v439, 4
        %v441 = vadd.f32 %v439, %v440
        %v442 = vrot.slane %v441, 2
        %v443 = vadd.f32 %v441, %v442
        %v444 = vrot.slane %v443, 1
        %v445 = vadd.f32 %v443, %v444
        %v446 = vsel %vm346, %v332, 0.0
        %v447 = vrot.slane %v446, 4
        %v448 = vadd.f32 %v446, %v447
        %v449 = vrot.slane %v448, 2
        %v450 = vadd.f32 %v448, %v449
        %v451 = vrot.slane %v450, 1
        %v452 = vadd.f32 %v450, %v451
        %v453 = vsel %vm346, %v333, 0.0
        %v454 = vrot.slane %v453, 4
        %v455 = vadd.f32 %v453, %v454
        %v456 = vrot.slane %v455, 2
        %v457 = vadd.f32 %v455, %v456
        %v458 = vrot.slane %v457, 1
        %v459 = vadd.f32 %v457, %v458
        %v460 = vsel %vm346, %v334, 0.0
        %v461 = vrot.slane %v460, 4
        %v462 = vadd.f32 %v460, %v461
        %v463 = vrot.slane %v462, 2
        %v464 = vadd.f32 %v462, %v463
        %v465 = vrot.slane %v464, 1
        %v466 = vadd.f32 %v464, %v465
        %v471 = vsel %vm379, %v452, %v445
        %v472 = vsel %vm381, %v459, %v471
        %v473 = vsel %vm383, %v466, %v472
        %v475 = vadd.f32 %v438, %v473
        %476 = vst [vmem:[#allocation3] sm:$0xf] %v475
      $region36: #{custom_loss.1} parent=27 // pred_fallthru
        _
      %p477 = scmp.lt.s32.totalorder %s433, 2
      // Predicated region
      $region37: #{custom_loss.1} parent=27 // pred_check
        %p478 = pneg %p477
      $region38: #{custom_loss.1} parent=27 // pred_check_branch
        %480 = sbr.rel (%p478) target = $region40
      $region39: #{custom_loss.1} parent=27 // pred_region
        %v481 = vlaneseq
        %v482 = vshrl.u32 %v481, 7
        %v483 = vld [vmem:[#allocation3] sm:$0xf]
        %v484 = vstv %s433
        %vm485 = vcmp.lt.s32.totalorder %v482, %v484
        %v486 = vsel %vm485, 1, 0
        %vm487 = vcmp.eq.s32.totalorder %v486, 1
        %v488 = vsel %vm487, %v331, 0.0
        %v489 = vsel %vm487, %v332, 0.0
        %v490 = vsel %vm487, %v333, 0.0
        %v491 = vsel %vm487, %v334, 0.0
        %v492 = vsel %vm346, %v488, 0.0
        %v493 = vrot.slane %v492, 4
        %v494 = vadd.f32 %v492, %v493
        %v495 = vrot.slane %v494, 2
        %v496 = vadd.f32 %v494, %v495
        %v497 = vrot.slane %v496, 1
        %v498 = vadd.f32 %v496, %v497
        %v499 = vsel %vm346, %v489, 0.0
        %v500 = vrot.slane %v499, 4
        %v501 = vadd.f32 %v499, %v500
        %v502 = vrot.slane %v501, 2
        %v503 = vadd.f32 %v501, %v502
        %v504 = vrot.slane %v503, 1
        %v505 = vadd.f32 %v503, %v504
        %v506 = vsel %vm346, %v490, 0.0
        %v507 = vrot.slane %v506, 4
        %v508 = vadd.f32 %v506, %v507
        %v509 = vrot.slane %v508, 2
        %v510 = vadd.f32 %v508, %v509
        %v511 = vrot.slane %v510, 1
        %v512 = vadd.f32 %v510, %v511
        %v513 = vsel %vm346, %v491, 0.0
        %v514 = vrot.slane %v513, 4
        %v515 = vadd.f32 %v513, %v514
        %v516 = vrot.slane %v515, 2
        %v517 = vadd.f32 %v515, %v516
        %v518 = vrot.slane %v517, 1
        %v519 = vadd.f32 %v517, %v518
        %v524 = vsel %vm379, %v505, %v498
        %v525 = vsel %vm381, %v512, %v524
        %v526 = vsel %vm383, %v519, %v525
        %v528 = vadd.f32 %v483, %v526
        %529 = vst [vmem:[#allocation3] sm:$0xf] %v528
      $region40: #{custom_loss.1} parent=27 // pred_fallthru
        _
      // Predicated region
      $region41: #{custom_loss.1} parent=27 // pred_check
        %p530 = pneg %p324
      $region42: #{custom_loss.1} parent=27 // pred_check_branch
        %532 = sbr.rel (%p530) target = $region44
      $region43: #{custom_loss.1} parent=27 // pred_region
        %v533 = vld [vmem:[#allocation2] sm:$0xf]
        %vm534 = vcmask 1043456
        %v535 = vsel %vm534, %v533, 0.0
        %536 = vadd.xlane.f32.xlu0 %v535
        %v537 = vpop.xlane.xlu0 %536
        %vm538 = vcmask 3072
        %539 = vst.msk [vmem:[%s309] sm:$0xf] %vm538, %v537
        %v540 = vld [vmem:[#allocation3] sm:$0xf]
        %v541 = vsel %vm534, %v540, 0.0
        %542 = vadd.xlane.f32.xlu0 %v541
        %v543 = vpop.xlane.xlu0 %542
        %544 = vst.msk [vmem:[%s316] sm:$0xf] %vm538, %v543
        %v545 = vld [vmem:[#allocation4] sm:$0xf]
        %v546 = vsel %vm534, %v545, 0.0
        %547 = vadd.xlane.f32.xlu0 %v546
        %v548 = vpop.xlane.xlu0 %547
        %549 = vst.msk [vmem:[%s323] sm:$0xf] %vm538, %v548
      $region44: #{custom_loss.1} parent=27 // pred_fallthru
        _
      %p550 = scmp.lt.s32.totalorder %s21, 1
      %s551 = scalar_select %p550, %s21, 1
      %p552 = scmp.lt.s32.totalorder %s22, 0
      %s553 = scalar_select %p552, %s22, 0
      %s554 = sadd.s32 %s553, %s551
      %s555 = smul.addr %s554, 4
      %s556 = scalar_lea.vmem %s2, %s555
      %p557 = scmp.lt.s32.totalorder %s21, 1
      %s558 = scalar_select %p557, %s21, 1
      %p559 = scmp.lt.s32.totalorder %s22, 0
      %s560 = scalar_select %p559, %s22, 0
      %s561 = sadd.s32 %s560, %s558
      %s562 = smul.addr %s561, 4
      %s563 = scalar_lea.vmem %s3, %s562
      %p564 = scmp.lt.s32.totalorder %s21, 1
      %s565 = scalar_select %p564, %s21, 1
      %p566 = scmp.lt.s32.totalorder %s22, 0
      %s567 = scalar_select %p566, %s22, 0
      %s568 = sadd.s32 %s567, %s565
      %s569 = smul.addr %s568, 4
      %s570 = scalar_lea.vmem %s4, %s569
      // Predicated region
      $region45: #{custom_loss.1} parent=27 // pred_check
        %p571 = pneg %p119
      $region46: #{custom_loss.1} parent=27 // pred_check_branch
        %573 = sbr.rel (%p571) target = $region48
      $region47: #{custom_loss.1} parent=27 // pred_region
        _
      $region48: #{custom_loss.1} parent=27 // pred_fallthru
        _
      // Predicated region
      $region49: #{custom_loss.1} parent=27 // pred_check
        %p574 = pneg %p147
      $region50: #{custom_loss.1} parent=27 // pred_check_branch
        %576 = sbr.rel (%p574) target = $region52
      $region51: #{custom_loss.1} parent=27 // pred_region
        _
      $region52: #{custom_loss.1} parent=27 // pred_fallthru
        _
      // Predicated region
      $region53: #{custom_loss.1} parent=27 // pred_check
        %p577 = pneg %p175
      $region54: #{custom_loss.1} parent=27 // pred_check_branch
        %579 = sbr.rel (%p577) target = $region56
      $region55: #{custom_loss.1} parent=27 // pred_region
        _
      $region56: #{custom_loss.1} parent=27 // pred_fallthru
        _
    $region28: #{custom_loss.1} parent=5 // pred_fallthru
      _
    %p580 = scmp.le.s32.totalorder 2, %s11
    // Predicated region
    $region57: #{custom_loss.1} parent=5 // pred_check
      %p581 = pneg %p580
    $region58: #{custom_loss.1} parent=5 // pred_check_branch
      %583 = sbr.rel (%p581) target = $region60
    $region59: #{custom_loss.1} parent=5 // pred_region
      %s584 = ssub.s32 %s11, 2
      // Predicated region
      $region61: #{custom_loss.1} parent=59 // pred_check
        %p585 = pneg %p125
      $region62: #{custom_loss.1} parent=59 // pred_check_branch
        %587 = sbr.rel (%p585) target = $region64
      $region63: #{custom_loss.1} parent=59 // pred_region
        %p588 = scmp.lt.s32.totalorder %s24, 1
        %s589 = scalar_select %p588, %s24, 1
        %p590 = scmp.lt.s32.totalorder %s25, 0
        %s591 = scalar_select %p590, %s25, 0
        %s592 = sadd.s32 %s591, %s589
        %s593 = smul.addr %s592, 4
        %s594 = scalar_lea.vmem %s2, %s593
      $region64: #{custom_loss.1} parent=59 // pred_fallthru
        _
      // Predicated region
      $region65: #{custom_loss.1} parent=59 // pred_check
        %p595 = pneg %p153
      $region66: #{custom_loss.1} parent=59 // pred_check_branch
        %597 = sbr.rel (%p595) target = $region68
      $region67: #{custom_loss.1} parent=59 // pred_region
        %p598 = scmp.lt.s32.totalorder %s24, 1
        %s599 = scalar_select %p598, %s24, 1
        %p600 = scmp.lt.s32.totalorder %s25, 0
        %s601 = scalar_select %p600, %s25, 0
        %s602 = sadd.s32 %s601, %s599
        %s603 = smul.addr %s602, 4
        %s604 = scalar_lea.vmem %s3, %s603
      $region68: #{custom_loss.1} parent=59 // pred_fallthru
        _
      // Predicated region
      $region69: #{custom_loss.1} parent=59 // pred_check
        %p605 = pneg %p181
      $region70: #{custom_loss.1} parent=59 // pred_check_branch
        %607 = sbr.rel (%p605) target = $region72
      $region71: #{custom_loss.1} parent=59 // pred_region
        %p608 = scmp.lt.s32.totalorder %s24, 1
        %s609 = scalar_select %p608, %s24, 1
        %p610 = scmp.lt.s32.totalorder %s25, 0
        %s611 = scalar_select %p610, %s25, 0
        %s612 = sadd.s32 %s611, %s609
        %s613 = smul.addr %s612, 4
        %s614 = scalar_lea.vmem %s4, %s613
      $region72: #{custom_loss.1} parent=59 // pred_fallthru
        _
    $region60: #{custom_loss.1} parent=5 // pred_fallthru
      _
  $region6: #{custom_loss.1} parent=0 // loop_footer
    %s15 = sadd.s32 1, %s11
  $region7: #{custom_loss.1} parent=0 // loop_footer_branch
    %10 = sbr.rel target = $region3
  $region8: #{custom_loss.1} parent=0 // loop_exit
    _

</llo_original>
